<compile_context>
chip_gen: v6e
topology: v6e:2x2x1
jax: 0.10.0
libtpu: 0.0.40
codegen_flags: <defaults>
</compile_context>

<pallas_src>
import functools

import jax
import jax.numpy as jnp
from jax.experimental import pallas as pl
from jax.experimental.pallas import tpu as pltpu

EPS = 1e-6
LANE = 128


def _gem_pow_mean_kernel(p_ref, x_ref, o_ref, acc_ref, *,
                         p_static, hw, tile_hw, num_hw_tiles, inv_hw):
    """Accumulates mean_{h,w}(clamp(x, eps) ** p) per (n, c) row.

    p_ref  : SMEM (1,) f32                 GeM exponent (general path only)
    x_ref  : VMEM (tile_rows, tile_hw)     input tile
    o_ref  : VMEM (tile_rows, 1) f32       pooled mean of x**p
    acc_ref: VMEM (tile_rows, 1) f32       running partial sum over hw
    """
    k = pl.program_id(1)

    @pl.when(k == 0)
    def _init():
        acc_ref[...] = jnp.zeros_like(acc_ref)

    x = x_ref[...].astype(jnp.float32)          # reduction math in f32
    x = jnp.maximum(x, EPS)                     # clamp(min=eps)

    if p_static is not None:
        # Fast path: small integer p -> VPU multiplies only (no EUP work).
        xp = x
        for _ in range(p_static - 1):
            xp = xp * x
    else:
        # General path: x ** p via EUP log/exp (x >= eps > 0, so log is safe).
        xp = jnp.exp(p_ref[0] * jnp.log(x))

    if num_hw_tiles > 1:
        # The last hw tile may run past H*W; Pallas leaves the out-of-bounds
        # part of the VMEM buffer unspecified, so mask it out of the sum.
        col = k * tile_hw + jax.lax.broadcasted_iota(jnp.int32, xp.shape, 1)
        xp = jnp.where(col < hw, xp, 0.0)

    acc_ref[...] += jnp.sum(xp, axis=-1, keepdims=True)

    @pl.when(k == num_hw_tiles - 1)
    def _finalize():
        o_ref[...] = acc_ref[...] * inv_hw


def _vmem_budget():
    """(per-tile f32 working-set target, vmem_limit_bytes), gated by TPU gen."""
    try:
        cap = int(getattr(pltpu.get_tpu_info(), "vmem_capacity_bytes", 0))
    except Exception:
        cap = 0
    if cap >= 100 * 1024 * 1024:               # v5e / v6e class: 128 MiB VMEM
        return 12 * 1024 * 1024, 80 * 1024 * 1024
    # v7x class (64 MiB VMEM) or unknown: stay conservative.
    return 6 * 1024 * 1024, 30 * 1024 * 1024


def _pick_tiles(rows, hw, itemsize, tile_bytes=None):
    """Pick (tile_rows, tile_hw, num_hw_tiles, vmem_limit_bytes)."""
    auto_target, vmem_limit = _vmem_budget()
    tile_target = int(tile_bytes) if tile_bytes is not None else auto_target

    hw_pad = pl.cdiv(hw, LANE) * LANE
    # Sub-32-bit dtypes pack along sublanes: keep tile_rows a multiple of the
    # packed sublane count (8 for f32, 16 for bf16/f16, 32 for int8/fp8).
    align = {1: 32, 2: 16}.get(int(itemsize), 8)
    rows_up = pl.cdiv(rows, align) * align

    # Budget is expressed on the f32 working set (the kernel upcasts to f32).
    min_rows = 8 * align
    if hw_pad * 4 * min_rows <= tile_target:
        tile_hw, num_hw_tiles = hw, 1           # whole (H, W) in one block
    else:
        # Large spatial input: tile the hw (reduction) axis in 128-lane chunks.
        tile_hw = max(LANE, (tile_target // (min_rows * 4)) // LANE * LANE)
        tile_hw = int(min(tile_hw, hw_pad))
        num_hw_tiles = int(pl.cdiv(hw, tile_hw))

    bytes_per_row = (pl.cdiv(tile_hw, LANE) * LANE) * 4
    t_budget = max(align, (tile_target // bytes_per_row) // align * align)
    # Keep >=4 row-grid steps when rows allow it: engages double-buffer
    # pipelining and lets v7x shard the "parallel" row axis over its 2 cores.
    desired_steps = 4 if rows >= 4 * align else (2 if rows >= 2 * align else 1)
    t_split = pl.cdiv(pl.cdiv(rows, desired_steps), align) * align
    tile_rows = int(max(align, min(t_budget, t_split, rows_up)))
    return tile_rows, int(tile_hw), num_hw_tiles, vmem_limit


def gem_forward(x, p, *, tile_bytes=None):
    """GeM pooling. x: (N, C, H, W); p: scalar or (1,) exponent -> (N, C, 1, 1)."""
    N, C, H, W = x.shape
    rows, hw = N * C, H * W
    x2 = x.reshape(rows, hw)                    # free view: spatial on lanes
    p_arr = jnp.asarray(p, dtype=jnp.float32).reshape((1,))

    # Host-side dispatch: frozen small-integer p (the common p=3 case) -> VPU
    # fast path; traced / non-integer p -> general exp/log path.
    p_static = None
    try:
        pv = float(p_arr[0])
        if abs(pv - round(pv)) < 1e-6 and 1 <= int(round(pv)) <= 8:
            p_static = int(round(pv))
    except (jax.errors.ConcretizationTypeError, TypeError):
        p_static = None

    tile_rows, tile_hw, num_hw_tiles, vmem_limit = _pick_tiles(
        rows, hw, x2.dtype.itemsize, tile_bytes)
    grid = (pl.cdiv(rows, tile_rows), num_hw_tiles)

    kernel = functools.partial(
        _gem_pow_mean_kernel, p_static=p_static, hw=hw, tile_hw=tile_hw,
        num_hw_tiles=num_hw_tiles, inv_hw=1.0 / float(hw))

    pow_mean = pl.pallas_call(
        kernel,
        out_shape=jax.ShapeDtypeStruct((rows, 1), jnp.float32),
        grid=grid,
        in_specs=[
            pl.BlockSpec(memory_space=pltpu.SMEM),                    # p (1,)
            # NOTE: if a profile ever shows exposed DMA at step boundaries,
            # add pipeline_mode=pl.Buffered(3) here (costs one extra tile).
            pl.BlockSpec((tile_rows, tile_hw), lambda i, k: (i, k)),  # x tile
        ],
        out_specs=pl.BlockSpec((tile_rows, 1), lambda i, k: (i, 0)),
        scratch_shapes=[pltpu.VMEM((tile_rows, 1), jnp.float32)],
        compiler_params=pltpu.CompilerParams(
            dimension_semantics=("parallel", "arbitrary"),
            vmem_limit_bytes=vmem_limit,
        ),
    )(p_arr, x2)

    # Lane-dense epilogue on the pooled (N*C,) vector: mean ** (1/p).  This is
    # the per-row transcendental work the review flagged; done here it runs on
    # a lane-packed tiny vector and fuses with the output reshape, instead of
    # issuing rows/8 x 2 EUP pushes on the kernel's (tile_rows, 1) column.
    mean = pow_mean[:, 0]
    inv_p = (1.0 / p_static) if p_static is not None else (1.0 / p_arr[0])
    y = mean ** inv_p
    return y.astype(x.dtype).reshape(N, C, 1, 1)


if __name__ == "__main__":
    key = jax.random.PRNGKey(0)
    # deterministic parameter init, matching nn.Parameter(torch.ones(1) * 3)
    p = jnp.ones((1,), dtype=jnp.float32) * 3.0

    def ref_gem(x, pv):
        xp = jnp.maximum(x.astype(jnp.float32), EPS) ** pv
        m = jnp.mean(xp, axis=(-2, -1), keepdims=True)
        return (m ** (1.0 / pv)).astype(x.dtype)

    # Test 1: small NCHW input (integer-p VPU fast path, single hw tile).
    x1 = jax.random.normal(key, (2, 4, 16, 16), dtype=jnp.float32)
    y1 = jax.block_until_ready(gem_forward(x1, p))
    assert y1.shape == (2, 4, 1, 1), y1.shape
    assert jnp.allclose(y1, ref_gem(x1, 3.0), rtol=1e-4, atol=1e-5)

    # Test 2: ragged row count (15 rows -> partial row tile) and 7x7 spatial
    # (non-128 lane width, relies on within-block lane masking).
    x2 = jax.random.normal(jax.random.PRNGKey(1), (3, 5, 7, 7), dtype=jnp.float32)
    y2 = jax.block_until_ready(gem_forward(x2, p))
    assert y2.shape == (3, 5, 1, 1), y2.shape
    assert jnp.allclose(y2, ref_gem(x2, 3.0), rtol=1e-4, atol=1e-5)

    # Test 3: force the spatial-tiled accumulator path (small tile budget) with
    # a non-integer p (general exp/log path) and an hw that needs masking.
    x3 = jax.random.normal(jax.random.PRNGKey(2), (1, 2, 31, 33), dtype=jnp.float32)
    p_frac = jnp.array([2.5], dtype=jnp.float32)
    y3 = jax.block_until_ready(gem_forward(x3, p_frac, tile_bytes=64 * 1024))
    assert y3.shape == (1, 2, 1, 1), y3.shape
    assert jnp.allclose(y3, ref_gem(x3, 2.5), rtol=1e-4, atol=1e-5)

    # Test 4: bf16 input (dtype-aware sublane alignment path).
    x4 = jax.random.normal(jax.random.PRNGKey(3), (2, 8, 14, 14),
                           dtype=jnp.bfloat16)
    y4 = jax.block_until_ready(gem_forward(x4, p))
    assert y4.shape == (2, 8, 1, 1), y4.shape
    assert jnp.allclose(y4.astype(jnp.float32),
                        ref_gem(x4, 3.0).astype(jnp.float32),
                        rtol=2e-2, atol=2e-2)

    print("KERNEL_OK")
</pallas_src>

<mosaic_0001>
module attributes {stable_mosaic.version = 11 : i64} {
  func.func @_gem_pow_mean_kernel(%arg0: i32, %arg1: i32, %arg2: memref<1xf32, #tpu.memory_space<smem>>, %arg3: memref<8x256xf32, #tpu.memory_space<vmem>>, %arg4: memref<8x1xf32, #tpu.memory_space<vmem>>, %arg5: memref<8x1xf32, #tpu.memory_space<vmem>>) attributes {dimension_semantics = [#tpu.dimension_semantics<parallel>, #tpu.dimension_semantics<arbitrary>], iteration_bounds = array<i64: 1, 1>, scalar_prefetch = 0 : i64, scratch_operands = 1 : i64, tpu.core_type = #tpu.core_type<tc>, window_params = [{transform_indices = @transform_0, window_bounds = array<i64: 1>}, {transform_indices = @transform_1, window_bounds = array<i64: 8, 256>}, {transform_indices = @transform_2, window_bounds = array<i64: 8, 1>}]} {
    %c0_i32 = arith.constant 0 : i32
    %0 = arith.cmpi eq, %arg1, %c0_i32 : i32
    %1 = arith.extui %0 : i1 to i32
    %c0_i32_0 = arith.constant 0 : i32
    %2 = arith.cmpi ne, %1, %c0_i32_0 : i32
    scf.if %2 {
      %cst_9 = arith.constant 0.000000e+00 : f32
      %16 = vector.broadcast %cst_9 : f32 to vector<8x1xf32>
      %c0_10 = arith.constant 0 : index
      %c0_11 = arith.constant 0 : index
      %17 = vector.load %arg5[%c0_10, %c0_11] : memref<8x1xf32, #tpu.memory_space<vmem>>, vector<8x1xf32>
      tpu.vector_store %arg5[%c0_10, %c0_11], %16 {strides = array<i32>} : memref<8x1xf32, #tpu.memory_space<vmem>>, vector<8x1xf32>,
    } else {
    }
    %c0 = arith.constant 0 : index
    %c0_1 = arith.constant 0 : index
    %3 = vector.load %arg3[%c0, %c0_1] : memref<8x256xf32, #tpu.memory_space<vmem>>, vector<8x256xf32>
    %cst = arith.constant 9.99999997E-7 : f32
    %4 = vector.broadcast %cst : f32 to vector<8x256xf32>
    %5 = arith.maximumf %3, %4 : vector<8x256xf32>
    %6 = arith.mulf %5, %5 : vector<8x256xf32>
    %7 = arith.mulf %6, %5 : vector<8x256xf32>
    %c0_2 = arith.constant 0 : index
    %c0_3 = arith.constant 0 : index
    %8 = vector.load %arg5[%c0_2, %c0_3] : memref<8x1xf32, #tpu.memory_space<vmem>>, vector<8x1xf32>
    %cst_4 = arith.constant dense<0.000000e+00> : vector<8xf32>
    %9 = vector.multi_reduction <add>, %7, %cst_4 [1] : vector<8x256xf32> to vector<8xf32>
    %10 = vector.shape_cast %9 : vector<8xf32> to vector<8x1xf32>
    %11 = arith.addf %8, %10 : vector<8x1xf32>
    %c0_5 = arith.constant 0 : index
    %c0_6 = arith.constant 0 : index
    %12 = vector.load %arg5[%c0_5, %c0_6] : memref<8x1xf32, #tpu.memory_space<vmem>>, vector<8x1xf32>
    tpu.vector_store %arg5[%c0_5, %c0_6], %11 {strides = array<i32>} : memref<8x1xf32, #tpu.memory_space<vmem>>, vector<8x1xf32>,
    %c0_i32_7 = arith.constant 0 : i32
    %13 = arith.cmpi eq, %arg1, %c0_i32_7 : i32
    %14 = arith.extui %13 : i1 to i32
    %c0_i32_8 = arith.constant 0 : i32
    %15 = arith.cmpi ne, %14, %c0_i32_8 : i32
    scf.if %15 {
      %c0_9 = arith.constant 0 : index
      %c0_10 = arith.constant 0 : index
      %16 = vector.load %arg5[%c0_9, %c0_10] : memref<8x1xf32, #tpu.memory_space<vmem>>, vector<8x1xf32>
      %cst_11 = arith.constant 3.906250e-03 : f32
      %17 = vector.broadcast %cst_11 : f32 to vector<8x1xf32>
      %18 = arith.mulf %16, %17 : vector<8x1xf32>
      %c0_12 = arith.constant 0 : index
      %c0_13 = arith.constant 0 : index
      %19 = vector.load %arg4[%c0_12, %c0_13] : memref<8x1xf32, #tpu.memory_space<vmem>>, vector<8x1xf32>
      tpu.vector_store %arg4[%c0_12, %c0_13], %18 {strides = array<i32>} : memref<8x1xf32, #tpu.memory_space<vmem>>, vector<8x1xf32>,
    } else {
    }
    return
  }
  func.func @transform_0(%arg0: i32, %arg1: i32) -> i32 {
    %c0_i32 = arith.constant 0 : i32
    %c0_i32_0 = arith.constant 0 : i32
    return %c0_i32 : i32
  }
  func.func @transform_1(%arg0: i32, %arg1: i32) -> (i32, i32) {
    %c0_i32 = arith.constant 0 : i32
    return %arg0, %arg1 : i32, i32
  }
  func.func @transform_2(%arg0: i32, %arg1: i32) -> (i32, i32) {
    %c0_i32 = arith.constant 0 : i32
    %c0_i32_0 = arith.constant 0 : i32
    return %arg0, %c0_i32 : i32, i32
  }
}

</mosaic_0001>

<llo_original>
// kernel: tpu_custom_call.1
$region0: #{tpu_custom_call.1}
  #allocation0 [shape = 'u32[]', space=smem, size = 0x4, offset = 0x4, fixed_abs, tag = 'smem constant byte address 0x4 - core index']
  #allocation1 [shape = 'u32[144,128]{1,0:T(1,128)}', space=vmem, size = 0x12000, scoped, tag = 'internal scratch']
  #allocation2 [shape = 'f32[8,1]{1,0:T(8,128)}', space=vmem, size = 0x1000, scoped, tag = 'scratch operand']
  #allocation3 [shape = 'f32[1]{0:T(128)S(6)}', space=smem, size = 0x200, scoped, tag = 'scoped memory for tpu_custom_call.1']
  %s0 = inlined_call_operand.<no memory space> [shape: f32[1], index: 0, kind: input, shape index: {}]
  %s1 = inlined_call_operand.hbm [shape: f32[8,256], index: 1, kind: input, shape index: {}]
  %s2 = inlined_call_operand.vmem [shape: f32[8,1], index: 2, kind: output, shape index: {}]
  %s3 = sld [smem:[#allocation0]]
  $region30: #{tpu_custom_call.1} parent=0
    _
  %s5 = ssub.s32 1, %s3
  %s6 = scalar_select 0, %s5, %s3
  %7 = sst [smem:[#allocation3]] %s0
  $region1: #{tpu_custom_call.1} parent=0
    #allocation4 [shape = 'u8[8192]{0}', space=vmem, size = 0x2000, scoped, tag = 'input window, operand 1, single buffered']
    #allocation5 [shape = 's32[1]{0}', space=sflag, size = 0x4, scoped, tag = 'scoped memory for tpu_custom_call.1']
    %8 = vsyncpa [#allocation5], 0
    // Predicated region
    $region2: #{tpu_custom_call.1} parent=1 // pred_check
      _
    $region3: #{tpu_custom_call.1} parent=1 // pred_check_branch
      %10 = sbr.rel (0) target = $region5
    $region4: #{tpu_custom_call.1} parent=1 // pred_region
      _
    $region5: #{tpu_custom_call.1} parent=1 // pred_fallthru
      _
    // Predicated region
    $region6: #{tpu_custom_call.1} parent=1 // pred_check
      _
    $region7: #{tpu_custom_call.1} parent=1 // pred_check_branch
      %12 = sbr.rel (0) target = $region9
    $region8: #{tpu_custom_call.1} parent=1 // pred_region
      %s14 = ssub.s32 256, 256
      %15 = vsyncadd [#allocation5], %s14
      %s17 = sshll.u32 [#allocation4], 4
      %s18 = int_to_ptr.vmem [resolvable:$true] %s17
      %20 = dma.hbm_to_vmem [thread:$0]  %s1, 256, %s18, [#allocation5]
    $region9: #{tpu_custom_call.1} parent=1 // pred_fallthru
      _
    // Predicated region
    $region10: #{tpu_custom_call.1} parent=1 // pred_check
      _
    $region11: #{tpu_custom_call.1} parent=1 // pred_check_branch
      %22 = sbr.rel (0) target = $region13
    $region12: #{tpu_custom_call.1} parent=1 // pred_region
      %23 = dma.done [#allocation5], 256
    $region13: #{tpu_custom_call.1} parent=1 // pred_fallthru
      _
    %p24 = scmp.eq.s32.totalorder 0, 0
    // Predicated region
    $region14: #{tpu_custom_call.1} parent=1 // pred_check
      %p25 = pneg %p24
    $region15: #{tpu_custom_call.1} parent=1 // pred_check_branch
      %27 = sbr.rel (%p25) target = $region17
    $region16: #{tpu_custom_call.1} parent=1 // pred_region
      %vm28 = vcmask 7168
      %29 = vst.msk [vmem:[#allocation2] sm:$0xff] %vm28, 0.0
    $region17: #{tpu_custom_call.1} parent=1 // pred_fallthru
      _
    %v30 = vld [vmem:[#allocation4] sm:$0xff]
    %v31 = vld [vmem:[#allocation4 + $0x8] sm:$0xff]
    %v32 = vmax.f32 %v30, 1e-06
    %v33 = vmax.f32 %v31, 1e-06
    %v34 = vmul.f32 %v32, %v32
    %v35 = vmul.f32 %v33, %v33
    %v36 = vmul.f32 %v34, %v32
    %v37 = vmul.f32 %v35, %v33
    %v38 = vld [vmem:[#allocation2] sm:$0xff]
    %v39 = vadd.f32 %v36, %v37
    %40 = vadd.xlane.f32.xlu0 %v39
    %v41 = vpop.xlane.xlu0 %40
    %v42 = vadd.f32 %v38, %v41
    %vm43 = vcmask 7168
    %44 = vst.msk [vmem:[#allocation2] sm:$0xff] %vm43, %v42
    // Predicated region
    $region18: #{tpu_custom_call.1} parent=1 // pred_check
      %p45 = pneg %p24
    $region19: #{tpu_custom_call.1} parent=1 // pred_check_branch
      %47 = sbr.rel (%p45) target = $region21
    $region20: #{tpu_custom_call.1} parent=1 // pred_region
      %v48 = vld [vmem:[#allocation2] sm:$0xff]
      %v49 = vmul.f32 %v48, 0.00390625
      %50 = vst.msk [vmem:[%s2] sm:$0xff] %vm43, %v49
    $region21: #{tpu_custom_call.1} parent=1 // pred_fallthru
      _
    // Predicated region
    $region22: #{tpu_custom_call.1} parent=1 // pred_check
      _
    $region23: #{tpu_custom_call.1} parent=1 // pred_check_branch
      %52 = sbr.rel (0) target = $region25
    $region24: #{tpu_custom_call.1} parent=1 // pred_region
      _
    $region25: #{tpu_custom_call.1} parent=1 // pred_fallthru
      _
    // Predicated region
    $region26: #{tpu_custom_call.1} parent=1 // pred_check
      _
    $region27: #{tpu_custom_call.1} parent=1 // pred_check_branch
      %54 = sbr.rel (0) target = $region29
    $region28: #{tpu_custom_call.1} parent=1 // pred_region
      _
    $region29: #{tpu_custom_call.1} parent=1 // pred_fallthru
      _
    %55 = vsyncpa [#allocation5], 1

</llo_original>
